<compile_context>
chip_gen: v7x
topology: tpu7x:2x2x1
jax: 0.10.0
libtpu: 0.0.40
codegen_flags: <defaults>
</compile_context>

<pallas_src>
import functools

import jax
import jax.numpy as jnp
from jax import lax
from jax.experimental import pallas as pl
from jax.experimental.pallas import tpu as pltpu


def _dwconv_kernel(x_ref, w_ref, b_ref, o_ref, *, K, dilation, padding, NC):
    # x_ref : (H,   W*N*C)  VMEM  lane-dense input slab, col = w*(N*C)+n*C+c
    # w_ref : (K*K, Wo*N*C) VMEM  per-tap weight rows (pre-tiled per column)
    # b_ref : (1,   Wo*N*C) VMEM  bias row (pre-tiled per column)
    # o_ref : (Ho,  Wo*N*C) VMEM  lane-dense output slab
    H, WNC = x_ref.shape
    Ho, OW = o_ref.shape  # OW = Wo*N*C

    x = x_ref[...].astype(jnp.float32)  # (H, W*N*C)

    # In-register zero padding (no scratch, no padded HBM copy).  Padding W by
    # `padding` equals padding the flat lane axis by padding*N*C on each side,
    # because w is the slowest index within the lane axis.
    if padding > 0:
        zrow = jnp.zeros((padding, WNC), jnp.float32)
        x = jnp.concatenate([zrow, x, zrow], axis=0)              # (Hp, W*N*C)
        zcol = jnp.zeros((x.shape[0], padding * NC), jnp.float32)
        x = jnp.concatenate([zcol, x, zcol], axis=1)              # (Hp, Wp*N*C)

    # Bias init: sublane broadcast of the (1, Wo*N*C) bias row.
    acc = jnp.broadcast_to(b_ref[...], (Ho, OW)).astype(jnp.float32)

    # K*K static taps: each is a shifted in-register slice of the padded slab;
    # one full-width FMA per tap covers every (n, c) plane simultaneously.
    for dy in range(K):
        oy = dy * dilation
        for dx in range(K):
            ox = dx * dilation * NC
            t = dy * K + dx
            tap = x[oy:oy + Ho, ox:ox + OW]                       # (Ho, Wo*N*C)
            acc = acc + tap * w_ref[t:t + 1, :]

    o_ref[...] = acc.astype(o_ref.dtype)


def depthwise_conv2d(x, weight, bias, *, padding=1, dilation=1):
    """x: (N, C, H, W); weight: (C, 1, K, K); bias: (C,). Returns (N, C, Ho, Wo).

    Stride-1, channel-multiplier-1 depthwise conv (matches the PyTorch module).
    """
    N, C, H, W = x.shape
    K = weight.shape[-1]
    NC = N * C
    Ho = H + 2 * padding - dilation * (K - 1)
    Wo = W + 2 * padding - dilation * (K - 1)

    # Lane-dense slabs (wrapper-side layout plumbing).
    x_slab = jnp.transpose(x, (2, 3, 0, 1)).reshape(H, W * NC)     # (H, W*N*C)
    w_kk = weight.reshape(C, K * K)                                # (C, K*K)
    w_slab = jnp.tile(w_kk.T, (1, Wo * N))                         # (K*K, Wo*N*C)
    b_slab = jnp.tile(bias, Wo * N).reshape(1, Wo * NC)            # (1, Wo*N*C)

    kernel = functools.partial(
        _dwconv_kernel, K=K, dilation=dilation, padding=padding, NC=NC)

    # Single grid step: total footprint ~20 KB, far below scoped VMEM on
    # v5e/v6e (128 MiB) and v7x (64 MiB); avoids per-step overhead entirely.
    out_slab = pl.pallas_call(
        kernel,
        out_shape=jax.ShapeDtypeStruct((Ho, Wo * NC), x.dtype),
        in_specs=[
            pl.BlockSpec(memory_space=pltpu.MemorySpace.VMEM),
            pl.BlockSpec(memory_space=pltpu.MemorySpace.VMEM),
            pl.BlockSpec(memory_space=pltpu.MemorySpace.VMEM),
        ],
        out_specs=pl.BlockSpec(memory_space=pltpu.MemorySpace.VMEM),
    )(x_slab, w_slab, b_slab)

    # Unfold back to NCHW.
    return out_slab.reshape(Ho, Wo, N, C).transpose(2, 3, 0, 1)


def _reference(x, weight, bias, *, padding, dilation):
    C = x.shape[1]
    y = lax.conv_general_dilated(
        x, weight,
        window_strides=(1, 1),
        padding=((padding, padding), (padding, padding)),
        rhs_dilation=(dilation, dilation),
        dimension_numbers=("NCHW", "OIHW", "NCHW"),
        feature_group_count=C,
    )
    return y + bias.reshape(1, C, 1, 1)


if __name__ == "__main__":
    # DepthwiseConv(in_channels=4, kernel_size=3, padding=1, dilation=1)
    N, C, H, W = 2, 4, 16, 16
    K, PAD, DIL = 3, 1, 1

    key = jax.random.PRNGKey(0)
    kx, kw, kb = jax.random.split(key, 3)
    x = jax.random.normal(kx, (N, C, H, W), dtype=jnp.float32)
    # Deterministic params mimicking nn.Conv2d uniform(-bound, bound), fan_in = 1*K*K
    bound = 1.0 / (K * K) ** 0.5
    weight = jax.random.uniform(kw, (C, 1, K, K), jnp.float32, -bound, bound)
    bias = jax.random.uniform(kb, (C,), jnp.float32, -bound, bound)

    y = depthwise_conv2d(x, weight, bias, padding=PAD, dilation=DIL)
    y = jax.block_until_ready(y)

    y_ref = _reference(x, weight, bias, padding=PAD, dilation=DIL)
    assert y.shape == y_ref.shape == (N, C, H, W)
    assert jnp.allclose(y, y_ref, atol=1e-5, rtol=1e-5), "mismatch vs reference"
    print("KERNEL_OK")
</pallas_src>

<mosaic_0001>
module attributes {stable_mosaic.version = 11 : i64} {
  func.func @_dwconv_kernel(%arg0: memref<16x128xf32, #tpu.memory_space<vmem>>, %arg1: memref<9x128xf32, #tpu.memory_space<vmem>>, %arg2: memref<1x128xf32, #tpu.memory_space<vmem>>, %arg3: memref<16x128xf32, #tpu.memory_space<vmem>>) attributes {dimension_semantics = [], scalar_prefetch = 0 : i64, scratch_operands = 0 : i64, tpu.core_type = #tpu.core_type<tc>} {
    %c0 = arith.constant 0 : index
    %c0_0 = arith.constant 0 : index
    %0 = vector.load %arg0[%c0, %c0_0] : memref<16x128xf32, #tpu.memory_space<vmem>>, vector<16x128xf32>
    %cst = arith.constant 0.000000e+00 : f32
    %1 = vector.broadcast %cst : f32 to vector<1x128xf32>
    %2 = tpu.concatenate %1, %0, %1 in 0 : vector<1x128xf32>, vector<16x128xf32>, vector<1x128xf32> -> vector<18x128xf32>
    %cst_1 = arith.constant 0.000000e+00 : f32
    %3 = vector.broadcast %cst_1 : f32 to vector<18x8xf32>
    %4 = tpu.concatenate %3, %2, %3 in 1 : vector<18x8xf32>, vector<18x128xf32>, vector<18x8xf32> -> vector<18x144xf32>
    %c0_2 = arith.constant 0 : index
    %c0_3 = arith.constant 0 : index
    %5 = vector.load %arg2[%c0_2, %c0_3] : memref<1x128xf32, #tpu.memory_space<vmem>>, vector<1x128xf32>
    %6 = vector.shape_cast %5 : vector<1x128xf32> to vector<1x128xf32>
    %7 = vector.broadcast %6 : vector<1x128xf32> to vector<16x128xf32>
    %8 = vector.extract_strided_slice %4 {offsets = [0, 0], sizes = [16, 128], strides = [1, 1]} : vector<18x144xf32> to vector<16x128xf32>
    %c0_4 = arith.constant 0 : index
    %c0_5 = arith.constant 0 : index
    %9 = vector.load %arg1[%c0_4, %c0_5] : memref<9x128xf32, #tpu.memory_space<vmem>>, vector<1x128xf32>
    %10 = vector.broadcast %9 : vector<1x128xf32> to vector<16x128xf32>
    %11 = arith.mulf %8, %10 : vector<16x128xf32>
    %12 = arith.addf %7, %11 : vector<16x128xf32>
    %13 = vector.extract_strided_slice %4 {offsets = [0, 8], sizes = [16, 128], strides = [1, 1]} : vector<18x144xf32> to vector<16x128xf32>
    %c1 = arith.constant 1 : index
    %c0_6 = arith.constant 0 : index
    %14 = vector.load %arg1[%c1, %c0_6] : memref<9x128xf32, #tpu.memory_space<vmem>>, vector<1x128xf32>
    %15 = vector.broadcast %14 : vector<1x128xf32> to vector<16x128xf32>
    %16 = arith.mulf %13, %15 : vector<16x128xf32>
    %17 = arith.addf %12, %16 : vector<16x128xf32>
    %18 = vector.extract_strided_slice %4 {offsets = [0, 16], sizes = [16, 128], strides = [1, 1]} : vector<18x144xf32> to vector<16x128xf32>
    %c2 = arith.constant 2 : index
    %c0_7 = arith.constant 0 : index
    %19 = vector.load %arg1[%c2, %c0_7] : memref<9x128xf32, #tpu.memory_space<vmem>>, vector<1x128xf32>
    %20 = vector.broadcast %19 : vector<1x128xf32> to vector<16x128xf32>
    %21 = arith.mulf %18, %20 : vector<16x128xf32>
    %22 = arith.addf %17, %21 : vector<16x128xf32>
    %23 = vector.extract_strided_slice %4 {offsets = [1, 0], sizes = [16, 128], strides = [1, 1]} : vector<18x144xf32> to vector<16x128xf32>
    %c3 = arith.constant 3 : index
    %c0_8 = arith.constant 0 : index
    %24 = vector.load %arg1[%c3, %c0_8] : memref<9x128xf32, #tpu.memory_space<vmem>>, vector<1x128xf32>
    %25 = vector.broadcast %24 : vector<1x128xf32> to vector<16x128xf32>
    %26 = arith.mulf %23, %25 : vector<16x128xf32>
    %27 = arith.addf %22, %26 : vector<16x128xf32>
    %28 = vector.extract_strided_slice %4 {offsets = [1, 8], sizes = [16, 128], strides = [1, 1]} : vector<18x144xf32> to vector<16x128xf32>
    %c4 = arith.constant 4 : index
    %c0_9 = arith.constant 0 : index
    %29 = vector.load %arg1[%c4, %c0_9] : memref<9x128xf32, #tpu.memory_space<vmem>>, vector<1x128xf32>
    %30 = vector.broadcast %29 : vector<1x128xf32> to vector<16x128xf32>
    %31 = arith.mulf %28, %30 : vector<16x128xf32>
    %32 = arith.addf %27, %31 : vector<16x128xf32>
    %33 = vector.extract_strided_slice %4 {offsets = [1, 16], sizes = [16, 128], strides = [1, 1]} : vector<18x144xf32> to vector<16x128xf32>
    %c5 = arith.constant 5 : index
    %c0_10 = arith.constant 0 : index
    %34 = vector.load %arg1[%c5, %c0_10] : memref<9x128xf32, #tpu.memory_space<vmem>>, vector<1x128xf32>
    %35 = vector.broadcast %34 : vector<1x128xf32> to vector<16x128xf32>
    %36 = arith.mulf %33, %35 : vector<16x128xf32>
    %37 = arith.addf %32, %36 : vector<16x128xf32>
    %38 = vector.extract_strided_slice %4 {offsets = [2, 0], sizes = [16, 128], strides = [1, 1]} : vector<18x144xf32> to vector<16x128xf32>
    %c6 = arith.constant 6 : index
    %c0_11 = arith.constant 0 : index
    %39 = vector.load %arg1[%c6, %c0_11] : memref<9x128xf32, #tpu.memory_space<vmem>>, vector<1x128xf32>
    %40 = vector.broadcast %39 : vector<1x128xf32> to vector<16x128xf32>
    %41 = arith.mulf %38, %40 : vector<16x128xf32>
    %42 = arith.addf %37, %41 : vector<16x128xf32>
    %43 = vector.extract_strided_slice %4 {offsets = [2, 8], sizes = [16, 128], strides = [1, 1]} : vector<18x144xf32> to vector<16x128xf32>
    %c7 = arith.constant 7 : index
    %c0_12 = arith.constant 0 : index
    %44 = vector.load %arg1[%c7, %c0_12] : memref<9x128xf32, #tpu.memory_space<vmem>>, vector<1x128xf32>
    %45 = vector.broadcast %44 : vector<1x128xf32> to vector<16x128xf32>
    %46 = arith.mulf %43, %45 : vector<16x128xf32>
    %47 = arith.addf %42, %46 : vector<16x128xf32>
    %48 = vector.extract_strided_slice %4 {offsets = [2, 16], sizes = [16, 128], strides = [1, 1]} : vector<18x144xf32> to vector<16x128xf32>
    %c8 = arith.constant 8 : index
    %c0_13 = arith.constant 0 : index
    %49 = vector.load %arg1[%c8, %c0_13] : memref<9x128xf32, #tpu.memory_space<vmem>>, vector<1x128xf32>
    %50 = vector.broadcast %49 : vector<1x128xf32> to vector<16x128xf32>
    %51 = arith.mulf %48, %50 : vector<16x128xf32>
    %52 = arith.addf %47, %51 : vector<16x128xf32>
    %c0_14 = arith.constant 0 : index
    %c0_15 = arith.constant 0 : index
    %53 = vector.load %arg3[%c0_14, %c0_15] : memref<16x128xf32, #tpu.memory_space<vmem>>, vector<16x128xf32>
    tpu.vector_store %arg3[%c0_14, %c0_15], %52 {strides = array<i32>} : memref<16x128xf32, #tpu.memory_space<vmem>>, vector<16x128xf32>,
    return
  }
}

</mosaic_0001>

<llo_original>
// kernel: tpu_custom_call.1
$region0: #{tpu_custom_call.1}
  #allocation0 [shape = 'u32[]', space=smem, size = 0x4, offset = 0x4, fixed_abs, tag = 'smem constant byte address 0x4 - core index']
  #allocation1 [shape = 'u32[144,128]{1,0:T(1,128)}', space=vmem, size = 0x12000, scoped, tag = 'internal scratch']
  %s0 = inlined_call_operand.hbm [shape: f32[16,128], index: 0, kind: input, shape index: {}]
  %s1 = inlined_call_operand.hbm [shape: f32[9,128], index: 1, kind: input, shape index: {}]
  %s2 = inlined_call_operand.vmem [shape: f32[1,128], index: 2, kind: input, shape index: {}]
  %s3 = inlined_call_operand.hbm [shape: f32[16,128], index: 3, kind: output, shape index: {}]
  %s4 = sld [smem:[#allocation0]]
  $region30: #{tpu_custom_call.1} parent=0
    _
  %s6 = ssub.s32 1, %s4
  %s7 = scalar_select 0, %s6, %s4
  $region1: #{tpu_custom_call.1} parent=0
    #allocation2 [shape = 'u8[8192]{0}', space=vmem, size = 0x2000, scoped, tag = 'input window, operand 0, single buffered']
    #allocation3 [shape = 's32[1]{0}', space=sflag, size = 0x4, scoped, tag = 'scoped memory for tpu_custom_call.1']
    #allocation4 [shape = 's32[1]{0}', space=sflag, size = 0x4, scoped, tag = 'scoped memory for tpu_custom_call.1']
    #allocation5 [shape = 'u8[8192]{0}', space=vmem, size = 0x2000, scoped, tag = 'input window, operand 1, single buffered']
    #allocation6 [shape = 's32[1]{0}', space=sflag, size = 0x4, scoped, tag = 'scoped memory for tpu_custom_call.1']
    #allocation7 [shape = 'u8[8192]{0}', space=vmem, size = 0x2000, scoped, tag = 'output window, operand 0, single buffered']
    %8 = vsyncpa [#allocation3], 0
    %9 = vsyncpa [#allocation6], 0
    %10 = vsyncpa [#allocation4], 0
    // Predicated region
    $region2: #{tpu_custom_call.1} parent=1 // pred_check
      _
    $region3: #{tpu_custom_call.1} parent=1 // pred_check_branch
      %12 = sbr.rel (0) target = $region5
    $region4: #{tpu_custom_call.1} parent=1 // pred_region
      %s14 = ssub.s32 256, 256
      %15 = vsyncadd [#allocation3], %s14
      %s16 = sshll.u32 [#allocation2], 4
      %s17 = int_to_ptr.vmem [resolvable:$true] %s16
      %22 = dma.hbm_to_vmem [thread:$0]  %s0, 256, %s17, [#allocation3], 128, 128, 8
    $region5: #{tpu_custom_call.1} parent=1 // pred_fallthru
      _
    // Predicated region
    $region6: #{tpu_custom_call.1} parent=1 // pred_check
      _
    $region7: #{tpu_custom_call.1} parent=1 // pred_check_branch
      %24 = sbr.rel (0) target = $region9
    $region8: #{tpu_custom_call.1} parent=1 // pred_region
      %s26 = ssub.s32 256, 256
      %27 = vsyncadd [#allocation6], %s26
      %s28 = sshll.u32 [#allocation5], 4
      %s29 = int_to_ptr.vmem [resolvable:$true] %s28
      %34 = dma.hbm_to_vmem [thread:$0]  %s1, 256, %s29, [#allocation6], 128, 128, 8
    $region9: #{tpu_custom_call.1} parent=1 // pred_fallthru
      _
    // Predicated region
    $region10: #{tpu_custom_call.1} parent=1 // pred_check
      _
    $region11: #{tpu_custom_call.1} parent=1 // pred_check_branch
      %36 = sbr.rel (0) target = $region13
    $region12: #{tpu_custom_call.1} parent=1 // pred_region
      _
    $region13: #{tpu_custom_call.1} parent=1 // pred_fallthru
      _
    // Predicated region
    $region14: #{tpu_custom_call.1} parent=1 // pred_check
      _
    $region15: #{tpu_custom_call.1} parent=1 // pred_check_branch
      %38 = sbr.rel (0) target = $region17
    $region16: #{tpu_custom_call.1} parent=1 // pred_region
      %39 = dma.done [#allocation3], 256
    $region17: #{tpu_custom_call.1} parent=1 // pred_fallthru
      _
    // Predicated region
    $region18: #{tpu_custom_call.1} parent=1 // pred_check
      _
    $region19: #{tpu_custom_call.1} parent=1 // pred_check_branch
      %41 = sbr.rel (0) target = $region21
    $region20: #{tpu_custom_call.1} parent=1 // pred_region
      %42 = dma.done [#allocation6], 256
    $region21: #{tpu_custom_call.1} parent=1 // pred_fallthru
      _
    %v43 = vld [vmem:[#allocation2] sm:$0xff]
    %v44 = vld [vmem:[#allocation2 + $0x8] sm:$0xff]
    %vm47 = vcmask 1040384
    %v48 = vrot.slane %v43, 7
    %v49 = vrot.slane %v44, 7
    %v50 = vsel %vm47, %v48, %v49
    %v53 = vsel %vm47, 0.0, %v48
    %v54 = vsel %vm47, %v49, 0.0
    %57 = vrot.lane.b32.xlu0 %v53, 8
    %v58 = vpop.permute.xlu0 %57
    %59 = vrot.lane.b32.xlu0 %v50, 8
    %v60 = vpop.permute.xlu0 %59
    %61 = vrot.lane.b32.xlu0 %v54, 8
    %v62 = vpop.permute.xlu0 %61
    %vm66 = vcmask 64512
    %v67 = vsel %vm66, 0.0, %v58
    %v68 = vsel %vm66, 0.0, %v60
    %v69 = vsel %vm66, 0.0, %v62
    %v70 = vsel %vm66, %v58, 0.0
    %v71 = vsel %vm66, %v60, 0.0
    %v72 = vsel %vm66, %v62, 0.0
    %v73 = vld [vmem:[%s2] sm:$0x1]
    %v75 = vlaneseq
    %v76 = vshrl.u32 %v75, 7
    %v77 = vsub.s32 0, %v76
    %v78 = vrot.slane %v73, %v77
    %v80 = vld [vmem:[#allocation5] sm:$0x1]
    %v81 = vlaneseq
    %v82 = vshrl.u32 %v81, 7
    %v83 = vsub.s32 0, %v82
    %v84 = vrot.slane %v80, %v83
    %v85 = vmul.f32 %v67, %v84
    %v86 = vmul.f32 %v68, %v84
    %v87 = vadd.f32 %v78, %v85
    %v88 = vadd.f32 %v78, %v86
    %v89 = vld [vmem:[#allocation5 + $0x1] sm:$0x1]
    %v90 = vlaneseq
    %v91 = vshrl.u32 %v90, 7
    %v92 = vsub.s32 0, %v91
    %v93 = vrot.slane %v89, %v92
    %95 = vrot.lane.b32.xlu0 %v93, 8
    %v96 = vpop.permute.xlu0 %95
    %v98 = vmul.f32 %v67, %v96
    %v99 = vmul.f32 %v70, %v96
    %v100 = vmul.f32 %v68, %v96
    %v101 = vmul.f32 %v71, %v96
    %106 = vrot.lane.b32.xlu0 %v98, 120
    %v107 = vpop.permute.xlu0 %106
    %108 = vrot.lane.b32.xlu0 %v99, 120
    %v109 = vpop.permute.xlu0 %108
    %110 = vrot.lane.b32.xlu0 %v100, 120
    %v111 = vpop.permute.xlu0 %110
    %112 = vrot.lane.b32.xlu0 %v101, 120
    %v113 = vpop.permute.xlu0 %112
    %vm114 = vcmask 982016
    %v115 = vsel %vm114, %v107, %v109
    %v116 = vsel %vm114, %v111, %v113
    %v119 = vadd.f32 %v87, %v115
    %v120 = vadd.f32 %v88, %v116
    %v121 = vld [vmem:[#allocation5 + $0x2] sm:$0x1]
    %v122 = vlaneseq
    %v123 = vshrl.u32 %v122, 7
    %v124 = vsub.s32 0, %v123
    %v125 = vrot.slane %v121, %v124
    %127 = vrot.lane.b32.xlu0 %v125, 16
    %v128 = vpop.permute.xlu0 %127
    %v130 = vmul.f32 %v67, %v128
    %v131 = vmul.f32 %v70, %v128
    %v132 = vmul.f32 %v68, %v128
    %v133 = vmul.f32 %v71, %v128
    %138 = vrot.lane.b32.xlu0 %v130, 112
    %v139 = vpop.permute.xlu0 %138
    %140 = vrot.lane.b32.xlu0 %v131, 112
    %v141 = vpop.permute.xlu0 %140
    %142 = vrot.lane.b32.xlu0 %v132, 112
    %v143 = vpop.permute.xlu0 %142
    %144 = vrot.lane.b32.xlu0 %v133, 112
    %v145 = vpop.permute.xlu0 %144
    %vm146 = vcmask 916480
    %v147 = vsel %vm146, %v139, %v141
    %v148 = vsel %vm146, %v143, %v145
    %v151 = vadd.f32 %v119, %v147
    %v152 = vadd.f32 %v120, %v148
    %v153 = vld [vmem:[#allocation5 + $0x3] sm:$0x1]
    %v154 = vlaneseq
    %v155 = vshrl.u32 %v154, 7
    %v156 = vsub.s32 0, %v155
    %v157 = vrot.slane %v153, %v156
    %v158 = vmul.f32 %v67, %v157
    %v159 = vmul.f32 %v68, %v157
    %v160 = vmul.f32 %v69, %v157
    %vm164 = vcmask 1046528
    %v165 = vrot.slane %v158, 1
    %v166 = vrot.slane %v159, 1
    %v167 = vsel %vm164, %v165, %v166
    %v168 = vrot.slane %v160, 1
    %v169 = vsel %vm164, %v166, %v168
    %v172 = vadd.f32 %v151, %v167
    %v173 = vadd.f32 %v152, %v169
    %v174 = vld [vmem:[#allocation5 + $0x4] sm:$0x1]
    %v175 = vlaneseq
    %v176 = vshrl.u32 %v175, 7
    %v177 = vsub.s32 0, %v176
    %v178 = vrot.slane %v174, %v177
    %180 = vrot.lane.b32.xlu0 %v178, 8
    %v181 = vpop.permute.xlu0 %180
    %v183 = vmul.f32 %v67, %v181
    %v184 = vmul.f32 %v70, %v181
    %v185 = vmul.f32 %v68, %v181
    %v186 = vmul.f32 %v71, %v181
    %v187 = vmul.f32 %v69, %v181
    %v188 = vmul.f32 %v72, %v181
    %v195 = vrot.slane %v183, 1
    %v196 = vrot.slane %v185, 1
    %v197 = vsel %vm164, %v195, %v196
    %v198 = vrot.slane %v184, 1
    %v199 = vrot.slane %v186, 1
    %v200 = vsel %vm164, %v198, %v199
    %v201 = vrot.slane %v187, 1
    %v202 = vsel %vm164, %v196, %v201
    %v203 = vrot.slane %v188, 1
    %v204 = vsel %vm164, %v199, %v203
    %205 = vrot.lane.b32.xlu0 %v197, 120
    %v206 = vpop.permute.xlu0 %205
    %207 = vrot.lane.b32.xlu0 %v200, 120
    %v208 = vpop.permute.xlu0 %207
    %209 = vrot.lane.b32.xlu0 %v202, 120
    %v210 = vpop.permute.xlu0 %209
    %211 = vrot.lane.b32.xlu0 %v204, 120
    %v212 = vpop.permute.xlu0 %211
    %v213 = vsel %vm114, %v206, %v208
    %v214 = vsel %vm114, %v210, %v212
    %v217 = vadd.f32 %v172, %v213
    %v218 = vadd.f32 %v173, %v214
    %v219 = vld [vmem:[#allocation5 + $0x5] sm:$0x1]
    %v220 = vlaneseq
    %v221 = vshrl.u32 %v220, 7
    %v222 = vsub.s32 0, %v221
    %v223 = vrot.slane %v219, %v222
    %225 = vrot.lane.b32.xlu0 %v223, 16
    %v226 = vpop.permute.xlu0 %225
    %v228 = vmul.f32 %v67, %v226
    %v229 = vmul.f32 %v70, %v226
    %v230 = vmul.f32 %v68, %v226
    %v231 = vmul.f32 %v71, %v226
    %v232 = vmul.f32 %v69, %v226
    %v233 = vmul.f32 %v72, %v226
    %v240 = vrot.slane %v228, 1
    %v241 = vrot.slane %v230, 1
    %v242 = vsel %vm164, %v240, %v241
    %v243 = vrot.slane %v229, 1
    %v244 = vrot.slane %v231, 1
    %v245 = vsel %vm164, %v243, %v244
    %v246 = vrot.slane %v232, 1
    %v247 = vsel %vm164, %v241, %v246
    %v248 = vrot.slane %v233, 1
    %v249 = vsel %vm164, %v244, %v248
    %250 = vrot.lane.b32.xlu0 %v242, 112
    %v251 = vpop.permute.xlu0 %250
    %252 = vrot.lane.b32.xlu0 %v245, 112
    %v253 = vpop.permute.xlu0 %252
    %254 = vrot.lane.b32.xlu0 %v247, 112
    %v255 = vpop.permute.xlu0 %254
    %256 = vrot.lane.b32.xlu0 %v249, 112
    %v257 = vpop.permute.xlu0 %256
    %v258 = vsel %vm146, %v251, %v253
    %v259 = vsel %vm146, %v255, %v257
    %v262 = vadd.f32 %v217, %v258
    %v263 = vadd.f32 %v218, %v259
    %v264 = vld [vmem:[#allocation5 + $0x6] sm:$0x1]
    %v265 = vlaneseq
    %v266 = vshrl.u32 %v265, 7
    %v267 = vsub.s32 0, %v266
    %v268 = vrot.slane %v264, %v267
    %v269 = vmul.f32 %v67, %v268
    %v270 = vmul.f32 %v68, %v268
    %v271 = vmul.f32 %v69, %v268
    %vm275 = vcmask 1045504
    %v276 = vrot.slane %v269, 2
    %v277 = vrot.slane %v270, 2
    %v278 = vsel %vm275, %v276, %v277
    %v279 = vrot.slane %v271, 2
    %v280 = vsel %vm275, %v277, %v279
    %v283 = vadd.f32 %v262, %v278
    %v284 = vadd.f32 %v263, %v280
    %v285 = vld [vmem:[#allocation5 + $0x7] sm:$0x1]
    %v286 = vlaneseq
    %v287 = vshrl.u32 %v286, 7
    %v288 = vsub.s32 0, %v287
    %v289 = vrot.slane %v285, %v288
    %291 = vrot.lane.b32.xlu0 %v289, 8
    %v292 = vpop.permute.xlu0 %291
    %v294 = vmul.f32 %v67, %v292
    %v295 = vmul.f32 %v70, %v292
    %v296 = vmul.f32 %v68, %v292
    %v297 = vmul.f32 %v71, %v292
    %v298 = vmul.f32 %v69, %v292
    %v299 = vmul.f32 %v72, %v292
    %v306 = vrot.slane %v294, 2
    %v307 = vrot.slane %v296, 2
    %v308 = vsel %vm275, %v306, %v307
    %v309 = vrot.slane %v295, 2
    %v310 = vrot.slane %v297, 2
    %v311 = vsel %vm275, %v309, %v310
    %v312 = vrot.slane %v298, 2
    %v313 = vsel %vm275, %v307, %v312
    %v314 = vrot.slane %v299, 2
    %v315 = vsel %vm275, %v310, %v314
    %316 = vrot.lane.b32.xlu0 %v308, 120
    %v317 = vpop.permute.xlu0 %316
    %318 = vrot.lane.b32.xlu0 %v311, 120
    %v319 = vpop.permute.xlu0 %318
    %320 = vrot.lane.b32.xlu0 %v313, 120
    %v321 = vpop.permute.xlu0 %320
    %322 = vrot.lane.b32.xlu0 %v315, 120
    %v323 = vpop.permute.xlu0 %322
    %v324 = vsel %vm114, %v317, %v319
    %v325 = vsel %vm114, %v321, %v323
    %v328 = vadd.f32 %v283, %v324
    %v329 = vadd.f32 %v284, %v325
    %v330 = vld [vmem:[#allocation5 + $0x8] sm:$0x1]
    %v331 = vlaneseq
    %v332 = vshrl.u32 %v331, 7
    %v333 = vsub.s32 0, %v332
    %v334 = vrot.slane %v330, %v333
    %336 = vrot.lane.b32.xlu0 %v334, 16
    %v337 = vpop.permute.xlu0 %336
    %v339 = vmul.f32 %v67, %v337
    %v340 = vmul.f32 %v70, %v337
    %v341 = vmul.f32 %v68, %v337
    %v342 = vmul.f32 %v71, %v337
    %v343 = vmul.f32 %v69, %v337
    %v344 = vmul.f32 %v72, %v337
    %v351 = vrot.slane %v339, 2
    %v352 = vrot.slane %v341, 2
    %v353 = vsel %vm275, %v351, %v352
    %v354 = vrot.slane %v340, 2
    %v355 = vrot.slane %v342, 2
    %v356 = vsel %vm275, %v354, %v355
    %v357 = vrot.slane %v343, 2
    %v358 = vsel %vm275, %v352, %v357
    %v359 = vrot.slane %v344, 2
    %v360 = vsel %vm275, %v355, %v359
    %361 = vrot.lane.b32.xlu0 %v353, 112
    %v362 = vpop.permute.xlu0 %361
    %363 = vrot.lane.b32.xlu0 %v356, 112
    %v364 = vpop.permute.xlu0 %363
    %365 = vrot.lane.b32.xlu0 %v358, 112
    %v366 = vpop.permute.xlu0 %365
    %367 = vrot.lane.b32.xlu0 %v360, 112
    %v368 = vpop.permute.xlu0 %367
    %v369 = vsel %vm146, %v362, %v364
    %v370 = vsel %vm146, %v366, %v368
    %v373 = vadd.f32 %v328, %v369
    %v374 = vadd.f32 %v329, %v370
    %375 = vst [vmem:[#allocation7] sm:$0xff] %v373
    %376 = vst [vmem:[#allocation7 + $0x8] sm:$0xff] %v374
    // Predicated region
    $region22: #{tpu_custom_call.1} parent=1 // pred_check
      _
    $region23: #{tpu_custom_call.1} parent=1 // pred_check_branch
      %378 = sbr.rel (0) target = $region25
    $region24: #{tpu_custom_call.1} parent=1 // pred_region
      %s380 = ssub.s32 256, 256
      %381 = vsyncadd [#allocation4], %s380
      %s382 = sshll.u32 [#allocation7], 4
      %s383 = int_to_ptr.vmem [resolvable:$true] %s382
      %388 = dma.vmem_to_hbm [thread:$0]  %s383, 256, %s3, [#allocation4], 128, 128, 8
    $region25: #{tpu_custom_call.1} parent=1 // pred_fallthru
      _
    // Predicated region
    $region26: #{tpu_custom_call.1} parent=1 // pred_check
      _
    $region27: #{tpu_custom_call.1} parent=1 // pred_check_branch
      %390 = sbr.rel (0) target = $region29
    $region28: #{tpu_custom_call.1} parent=1 // pred_region
      %391 = dma.done [#allocation4], 256
    $region29: #{tpu_custom_call.1} parent=1 // pred_fallthru
      _
    %392 = vsyncpa [#allocation3], 1
    %393 = vsyncpa [#allocation6], 1
    %394 = vsyncpa [#allocation4], 1

</llo_original>
